<compile_context>
chip_gen: v6e
topology: v6e:2x2x1
jax: 0.10.0
libtpu: 0.0.40
codegen_flags: <defaults>
</compile_context>

<pallas_src>
import jax
import jax.numpy as jnp
from jax.experimental import pallas as pl
from jax.experimental.pallas import tpu as pltpu


def _save_copy_kernel(x_ref, q_ref, k_ref, v_ref,
                      att_out_ref, q_out_ref, k_out_ref, v_out_ref,
                      sem):
    # All refs live in HBM (memory_space=pl.ANY).  Issue four direct
    # HBM->HBM DMAs and overlap them: start all, then wait all.
    copies = (
        pltpu.make_async_copy(x_ref, att_out_ref, sem.at[0]),
        pltpu.make_async_copy(q_ref, q_out_ref, sem.at[1]),
        pltpu.make_async_copy(k_ref, k_out_ref, sem.at[2]),
        pltpu.make_async_copy(v_ref, v_out_ref, sem.at[3]),
    )
    for c in copies:
        c.start()
    for c in copies:
        c.wait()


def _materialize_copies(X, Q, K, V):
    """One pallas_call that snapshots X, Q, K, V via HBM->HBM DMA."""
    any_spec = pl.BlockSpec(memory_space=pl.ANY)
    out_shapes = (
        jax.ShapeDtypeStruct(X.shape, X.dtype),   # curr_att_maps
        jax.ShapeDtypeStruct(Q.shape, Q.dtype),   # Q
        jax.ShapeDtypeStruct(K.shape, K.dtype),   # K
        jax.ShapeDtypeStruct(V.shape, V.dtype),   # V
    )
    return pl.pallas_call(
        _save_copy_kernel,
        in_specs=[any_spec, any_spec, any_spec, any_spec],
        out_specs=(any_spec, any_spec, any_spec, any_spec),
        out_shape=out_shapes,
        scratch_shapes=[pltpu.SemaphoreType.DMA((4,))],
    )(X, Q, K, V)


def save_att_maps(X, Q, K, V, *, materialize_copies=False):
    """Pallas implementation of SaveAttMaps.forward.

    Returns (out, saved):
      out   -- the forward return value (== X, bit identical).
      saved -- dict of the "parameters" the nn.Module would have stored.

    By default no data is copied (JAX arrays are immutable, so the saved
    references are already a faithful snapshot — zero HBM traffic).  Set
    materialize_copies=True to force fresh HBM buffers via the Pallas
    HBM->HBM DMA kernel (e.g. if the inputs will be donated/overwritten).
    """
    BH, N, M = X.shape
    _, _, D = Q.shape
    assert Q.shape == K.shape == V.shape == (BH, N, D)

    if materialize_copies:
        att, q_saved, k_saved, v_saved = _materialize_copies(X, Q, K, V)
    else:
        # Zero-copy "save": the optimal path for this module's semantics.
        att, q_saved, k_saved, v_saved = X, Q, K, V

    saved = {
        "curr_att_maps": att,
        "Q": q_saved,
        "K": k_saved,
        "V": v_saved,
    }
    # TODO(synk): nn.Parameter registration / in-place module state has no
    # Pallas equivalent; the returned `saved` pytree captures that state.
    return att, saved


if __name__ == "__main__":
    key = jax.random.PRNGKey(0)
    k1, k2, k3, k4 = jax.random.split(key, 4)

    BH = 8      # batch * heads (e.g. batch=2, heads=4)
    N = 16      # sequence length
    D = 32      # head dim

    X = jax.random.normal(k1, (BH, N, N), dtype=jnp.float32)   # attention maps
    Q = jax.random.normal(k2, (BH, N, D), dtype=jnp.float32)
    K = jax.random.normal(k3, (BH, N, D), dtype=jnp.float32)
    V = jax.random.normal(k4, (BH, N, D), dtype=jnp.float32)

    # 1) Exercise the Pallas HBM->HBM DMA kernel once (physical snapshot path).
    out, saved = save_att_maps(X, Q, K, V, materialize_copies=True)
    jax.block_until_ready(out)
    jax.block_until_ready(saved)

    assert jnp.array_equal(out, X)
    assert jnp.array_equal(saved["curr_att_maps"], X)
    assert jnp.array_equal(saved["Q"], Q)
    assert jnp.array_equal(saved["K"], K)
    assert jnp.array_equal(saved["V"], V)

    # 2) Default zero-copy path (the recommended, traffic-free form).
    out0, saved0 = save_att_maps(X, Q, K, V)
    jax.block_until_ready(out0)
    assert out0 is X
    assert saved0["Q"] is Q and saved0["K"] is K and saved0["V"] is V
    assert jnp.array_equal(out0, X)

    print("KERNEL_OK")
</pallas_src>

<mosaic_0001>
module attributes {stable_mosaic.version = 11 : i64} {
  func.func @_save_copy_kernel(%arg0: memref<8x16x16xf32, #tpu.memory_space<any>>, %arg1: memref<8x16x32xf32, #tpu.memory_space<any>>, %arg2: memref<8x16x32xf32, #tpu.memory_space<any>>, %arg3: memref<8x16x32xf32, #tpu.memory_space<any>>, %arg4: memref<8x16x16xf32, #tpu.memory_space<any>>, %arg5: memref<8x16x32xf32, #tpu.memory_space<any>>, %arg6: memref<8x16x32xf32, #tpu.memory_space<any>>, %arg7: memref<8x16x32xf32, #tpu.memory_space<any>>, %arg8: memref<4x!tpu.dma_semaphore, #tpu.memory_space<semaphore_mem>>) attributes {dimension_semantics = [], scalar_prefetch = 0 : i64, scratch_operands = 1 : i64, tpu.core_type = #tpu.core_type<tc>} {
    %c0_i32 = arith.constant 0 : i32
    %0 = tpu.memref_slice %arg8[%c0_i32] : memref<4x!tpu.dma_semaphore, #tpu.memory_space<semaphore_mem>> -> memref<1x!tpu.dma_semaphore, #tpu.memory_space<semaphore_mem>>
    %1 = tpu.memref_squeeze %0 : memref<1x!tpu.dma_semaphore, #tpu.memory_space<semaphore_mem>> -> memref<!tpu.dma_semaphore, #tpu.memory_space<semaphore_mem>>
    tpu.enqueue_dma source(%arg0 : memref<8x16x16xf32, #tpu.memory_space<any>>) target(%arg4 : memref<8x16x16xf32, #tpu.memory_space<any>>) target_semaphore(%1 : memref<!tpu.dma_semaphore, #tpu.memory_space<semaphore_mem>>)
    %c1_i32 = arith.constant 1 : i32
    %2 = tpu.memref_slice %arg8[%c1_i32] : memref<4x!tpu.dma_semaphore, #tpu.memory_space<semaphore_mem>> -> memref<1x!tpu.dma_semaphore, #tpu.memory_space<semaphore_mem>>
    %3 = tpu.memref_squeeze %2 : memref<1x!tpu.dma_semaphore, #tpu.memory_space<semaphore_mem>> -> memref<!tpu.dma_semaphore, #tpu.memory_space<semaphore_mem>>
    tpu.enqueue_dma source(%arg1 : memref<8x16x32xf32, #tpu.memory_space<any>>) target(%arg5 : memref<8x16x32xf32, #tpu.memory_space<any>>) target_semaphore(%3 : memref<!tpu.dma_semaphore, #tpu.memory_space<semaphore_mem>>)
    %c2_i32 = arith.constant 2 : i32
    %4 = tpu.memref_slice %arg8[%c2_i32] : memref<4x!tpu.dma_semaphore, #tpu.memory_space<semaphore_mem>> -> memref<1x!tpu.dma_semaphore, #tpu.memory_space<semaphore_mem>>
    %5 = tpu.memref_squeeze %4 : memref<1x!tpu.dma_semaphore, #tpu.memory_space<semaphore_mem>> -> memref<!tpu.dma_semaphore, #tpu.memory_space<semaphore_mem>>
    tpu.enqueue_dma source(%arg2 : memref<8x16x32xf32, #tpu.memory_space<any>>) target(%arg6 : memref<8x16x32xf32, #tpu.memory_space<any>>) target_semaphore(%5 : memref<!tpu.dma_semaphore, #tpu.memory_space<semaphore_mem>>)
    %c3_i32 = arith.constant 3 : i32
    %6 = tpu.memref_slice %arg8[%c3_i32] : memref<4x!tpu.dma_semaphore, #tpu.memory_space<semaphore_mem>> -> memref<1x!tpu.dma_semaphore, #tpu.memory_space<semaphore_mem>>
    %7 = tpu.memref_squeeze %6 : memref<1x!tpu.dma_semaphore, #tpu.memory_space<semaphore_mem>> -> memref<!tpu.dma_semaphore, #tpu.memory_space<semaphore_mem>>
    tpu.enqueue_dma source(%arg3 : memref<8x16x32xf32, #tpu.memory_space<any>>) target(%arg7 : memref<8x16x32xf32, #tpu.memory_space<any>>) target_semaphore(%7 : memref<!tpu.dma_semaphore, #tpu.memory_space<semaphore_mem>>)
    %c0_i32_0 = arith.constant 0 : i32
    %8 = tpu.memref_slice %arg8[%c0_i32_0] : memref<4x!tpu.dma_semaphore, #tpu.memory_space<semaphore_mem>> -> memref<1x!tpu.dma_semaphore, #tpu.memory_space<semaphore_mem>>
    %9 = tpu.memref_squeeze %8 : memref<1x!tpu.dma_semaphore, #tpu.memory_space<semaphore_mem>> -> memref<!tpu.dma_semaphore, #tpu.memory_space<semaphore_mem>>
    tpu.wait_dma2 semaphore(%9 : memref<!tpu.dma_semaphore, #tpu.memory_space<semaphore_mem>>) src(%arg0 : memref<8x16x16xf32, #tpu.memory_space<any>>) dst(%arg4 : memref<8x16x16xf32, #tpu.memory_space<any>>)
    %c1_i32_1 = arith.constant 1 : i32
    %10 = tpu.memref_slice %arg8[%c1_i32_1] : memref<4x!tpu.dma_semaphore, #tpu.memory_space<semaphore_mem>> -> memref<1x!tpu.dma_semaphore, #tpu.memory_space<semaphore_mem>>
    %11 = tpu.memref_squeeze %10 : memref<1x!tpu.dma_semaphore, #tpu.memory_space<semaphore_mem>> -> memref<!tpu.dma_semaphore, #tpu.memory_space<semaphore_mem>>
    tpu.wait_dma2 semaphore(%11 : memref<!tpu.dma_semaphore, #tpu.memory_space<semaphore_mem>>) src(%arg1 : memref<8x16x32xf32, #tpu.memory_space<any>>) dst(%arg5 : memref<8x16x32xf32, #tpu.memory_space<any>>)
    %c2_i32_2 = arith.constant 2 : i32
    %12 = tpu.memref_slice %arg8[%c2_i32_2] : memref<4x!tpu.dma_semaphore, #tpu.memory_space<semaphore_mem>> -> memref<1x!tpu.dma_semaphore, #tpu.memory_space<semaphore_mem>>
    %13 = tpu.memref_squeeze %12 : memref<1x!tpu.dma_semaphore, #tpu.memory_space<semaphore_mem>> -> memref<!tpu.dma_semaphore, #tpu.memory_space<semaphore_mem>>
    tpu.wait_dma2 semaphore(%13 : memref<!tpu.dma_semaphore, #tpu.memory_space<semaphore_mem>>) src(%arg2 : memref<8x16x32xf32, #tpu.memory_space<any>>) dst(%arg6 : memref<8x16x32xf32, #tpu.memory_space<any>>)
    %c3_i32_3 = arith.constant 3 : i32
    %14 = tpu.memref_slice %arg8[%c3_i32_3] : memref<4x!tpu.dma_semaphore, #tpu.memory_space<semaphore_mem>> -> memref<1x!tpu.dma_semaphore, #tpu.memory_space<semaphore_mem>>
    %15 = tpu.memref_squeeze %14 : memref<1x!tpu.dma_semaphore, #tpu.memory_space<semaphore_mem>> -> memref<!tpu.dma_semaphore, #tpu.memory_space<semaphore_mem>>
    tpu.wait_dma2 semaphore(%15 : memref<!tpu.dma_semaphore, #tpu.memory_space<semaphore_mem>>) src(%arg3 : memref<8x16x32xf32, #tpu.memory_space<any>>) dst(%arg7 : memref<8x16x32xf32, #tpu.memory_space<any>>)
    return
  }
}

</mosaic_0001>

<llo_original>
// kernel: tpu_custom_call.1
$region0: #{tpu_custom_call.1}
  #allocation0 [shape = 'u32[]', space=smem, size = 0x4, offset = 0x4, fixed_abs, tag = 'smem constant byte address 0x4 - core index']
  #allocation1 [shape = 'u32[144,128]{1,0:T(1,128)}', space=vmem, size = 0x12000, scoped, tag = 'internal scratch']
  #allocation2 [shape = 's32[4]{0}', space=sflag, size = 0x10, scoped, tag = 'scratch operand']
  #allocation3 [shape = 's32[]', space=sflag, size = 0x4, offset = 0, fixed_abs, tag = 'sflag constant byte address 0x0 - dummy sync flag']
  #allocation4 [shape = 'u32[0]{0}', space=smem, size = 0, offset = 0, fixed_abs, tag = 'smem constant byte address 0x0 - null']
  #allocation5 [shape = 's32[]', space=sflag, size = 0x4, offset = 0, fixed_abs, tag = 'sflag constant byte address 0x0 - dummy sync flag']
  #allocation6 [shape = 'u32[0]{0}', space=smem, size = 0, offset = 0, fixed_abs, tag = 'smem constant byte address 0x0 - null']
  #allocation7 [shape = 's32[]', space=sflag, size = 0x4, offset = 0, fixed_abs, tag = 'sflag constant byte address 0x0 - dummy sync flag']
  #allocation8 [shape = 'u32[0]{0}', space=smem, size = 0, offset = 0, fixed_abs, tag = 'smem constant byte address 0x0 - null']
  #allocation9 [shape = 's32[]', space=sflag, size = 0x4, offset = 0, fixed_abs, tag = 'sflag constant byte address 0x0 - dummy sync flag']
  #allocation10 [shape = 'u32[0]{0}', space=smem, size = 0, offset = 0, fixed_abs, tag = 'smem constant byte address 0x0 - null']
  %s0 = inlined_call_operand.hbm [shape: f32[8,16,16], index: 0, kind: input, shape index: {}]
  %s1 = inlined_call_operand.hbm [shape: f32[8,16,32], index: 1, kind: input, shape index: {}]
  %s2 = inlined_call_operand.hbm [shape: f32[8,16,32], index: 2, kind: input, shape index: {}]
  %s3 = inlined_call_operand.hbm [shape: f32[8,16,32], index: 3, kind: input, shape index: {}]
  %s4 = inlined_call_operand.hbm [shape: f32[8,16,16], index: 4, kind: output, shape index: {0}]
  %s5 = inlined_call_operand.hbm [shape: f32[8,16,32], index: 5, kind: output, shape index: {1}]
  %s6 = inlined_call_operand.hbm [shape: f32[8,16,32], index: 6, kind: output, shape index: {2}]
  %s7 = inlined_call_operand.hbm [shape: f32[8,16,32], index: 7, kind: output, shape index: {3}]
  %8 = xla_tuple %s4, %s5, %s6, %s7
  %s9 = sld [smem:[#allocation0]]
  $region2: #{tpu_custom_call.1} parent=0
    _
  %s11 = ssub.s32 1, %s9
  %s12 = scalar_select 0, %s11, %s9
  %s14 = sshll.u32 1, 14
  %s15 = sxor.u32 4294967295, %s14
  %19 = dma.general %s0, 2048, %s4, [#allocation2], 131072, [#allocation4], 0, 0
  %s20 = scalar_lea.sflag [#allocation2], 1
  %s22 = sshll.u32 1, 14
  %s23 = sxor.u32 4294967295, %s22
  %27 = dma.general %s1, 2048, %s5, %s20, 131072, [#allocation6], 0, 0
  %s28 = scalar_lea.sflag [#allocation2], 2
  %s30 = sshll.u32 1, 14
  %s31 = sxor.u32 4294967295, %s30
  %35 = dma.general %s2, 2048, %s6, %s28, 131072, [#allocation8], 0, 0
  %s36 = scalar_lea.sflag [#allocation2], 3
  %s38 = sshll.u32 1, 14
  %s39 = sxor.u32 4294967295, %s38
  %43 = dma.general %s3, 2048, %s7, %s36, 131072, [#allocation10], 0, 0
  %s44 = smul.u32 8, 16
  %s45 = smul.u32 %s44, 1
  %s46 = sshll.u32 %s45, 4
  %47 = dma.done [#allocation2], %s46
  %s48 = sshll.u32 %s45, 4
  %49 = dma.done %s20, %s48
  %s50 = sshll.u32 %s45, 4
  %51 = dma.done %s28, %s50
  %s52 = sshll.u32 %s45, 4
  %53 = dma.done %s36, %s52
  %54 = vsyncmov [#allocation2]
  %s55 = vpop.sfrf %54
  %p56 = scmp.eq.s32.totalorder %s55, 0
  %p57 = pneg %p56
  %59 = shalt.err (%p57)
  %s60 = scalar_lea.sflag [#allocation2], 1
  %61 = vsyncmov %s60
  %s62 = vpop.sfrf %61
  %p63 = scmp.eq.s32.totalorder %s62, 0
  %p64 = pneg %p63
  %66 = shalt.err (%p64)
  %s67 = scalar_lea.sflag [#allocation2], 2
  %68 = vsyncmov %s67
  %s69 = vpop.sfrf %68
  %p70 = scmp.eq.s32.totalorder %s69, 0
  %p71 = pneg %p70
  %73 = shalt.err (%p71)
  %s74 = scalar_lea.sflag [#allocation2], 3
  %75 = vsyncmov %s74
  %s76 = vpop.sfrf %75
  %p77 = scmp.eq.s32.totalorder %s76, 0
  %p78 = pneg %p77
  %80 = shalt.err (%p78)

</llo_original>
